<compile_context>
chip_gen: v7x
topology: tpu7x:2x2x1
jax: 0.10.0
libtpu: 0.0.40
codegen_flags: <defaults>
</compile_context>

<pallas_src>
import math

import numpy as np
import jax
import jax.numpy as jnp
from jax.experimental import pallas as pl
from jax.experimental.pallas import tpu as pltpu

_MATMUL_DTYPE = jnp.bfloat16     # MXU operand dtype (accumulation stays f32)
_ACT_DTYPE = jnp.bfloat16        # dtype of intermediate activations in HBM


# ---------------------------------------------------------------------------
# Pallas kernels
# ---------------------------------------------------------------------------

def _preact_kernel(x_ref, s1_ref, t1_ref, h_ref):
    """h = relu(x * scale1 + shift1)   (folded eval-mode BN1 + ReLU)."""
    x = x_ref[0].astype(jnp.float32)                              # (TH, W, Cin)
    h = jnp.maximum(x * s1_ref[...] + t1_ref[...], 0.0)
    h_ref[0] = h.astype(h_ref.dtype)


def _preact_shortcut_kernel(x_ref, s1_ref, t1_ref, wsc_ref, bsc_ref,
                            h_ref, sc_ref):
    """h = relu(bn1(x)); sc = Conv1x1(h) -- shortcut fused so h is consumed in VMEM."""
    x = x_ref[0].astype(jnp.float32)                              # (TH, W, Cin)
    h = jnp.maximum(x * s1_ref[...] + t1_ref[...], 0.0)
    h_ref[0] = h.astype(h_ref.dtype)
    th, w, cin = h.shape
    hm = h.reshape(th * w, cin).astype(_MATMUL_DTYPE)
    sc = jnp.dot(hm, wsc_ref[...].astype(_MATMUL_DTYPE),
                 preferred_element_type=jnp.float32)              # (TH*W, Cout)
    sc = sc.reshape(th, w, -1) + bsc_ref[...].astype(jnp.float32)
    sc_ref[0] = sc.astype(sc_ref.dtype)


def _conv3x3_patches(xp_ref, th, w):
    """Form the 9 taps of a 3x3/pad-1 conv for output rows [i*TH, (i+1)*TH) by slicing
    the zero-padded sample resident in VMEM, stacked on the contraction axis so the
    whole conv is a single (TH*W, 9*Cin) x (9*Cin, Cout) matmul."""
    r0 = pl.multiple_of(pl.program_id(1) * th, th)
    rows = xp_ref[0, pl.ds(r0, th + 2)]                           # (TH+2, W+2, Cin)
    taps = [rows[dy:dy + th, dx:dx + w, :]                        # (TH, W, Cin) each
            for dy in range(3) for dx in range(3)]
    patches = jnp.concatenate(taps, axis=-1)                      # (TH, W, 9*Cin)
    k = patches.shape[-1]
    return patches.reshape(th * w, k).astype(_MATMUL_DTYPE)


def _conv3x3_bn_relu_kernel(xp_ref, w_ref, s_ref, t_ref, o_ref):
    """o = relu(bn2(conv3x3(x)))  -- one deep-K MXU matmul per tile."""
    _, th, w, cout = o_ref.shape
    patches = _conv3x3_patches(xp_ref, th, w)                     # (TH*W, 9*Cin)
    acc = jnp.dot(patches, w_ref[...].astype(_MATMUL_DTYPE),
                  preferred_element_type=jnp.float32)             # (TH*W, Cout)
    y = acc.reshape(th, w, cout) * s_ref[...] + t_ref[...]
    o_ref[0] = jnp.maximum(y, 0.0).astype(o_ref.dtype)


def _conv3x3_add_kernel(xp_ref, w_ref, res_ref, o_ref):
    """o = conv3x3(x) + residual   (residual = identity x or shortcut conv output)."""
    _, th, w, cout = o_ref.shape
    patches = _conv3x3_patches(xp_ref, th, w)
    acc = jnp.dot(patches, w_ref[...].astype(_MATMUL_DTYPE),
                  preferred_element_type=jnp.float32)
    y = acc.reshape(th, w, cout) + res_ref[0].astype(jnp.float32)
    o_ref[0] = y.astype(o_ref.dtype)


# ---------------------------------------------------------------------------
# pallas_call wrappers
# ---------------------------------------------------------------------------

def _compiler_params():
    return pltpu.CompilerParams(
        dimension_semantics=("parallel", "parallel"),
        vmem_limit_bytes=32 * 1024 * 1024)


def _pick_row_tile(h):
    # >= 2 spatial tiles when possible so the DMA pipeline overlaps compute and the
    # (batch, tile) grid can shard across v7x's two TensorCores.
    # TODO(synk): at real ResNet sizes pick ~512-1024 spatial rows per tile and keep
    #             only a halo-row window resident instead of the full padded sample.
    if h > 8 and h % 8 == 0:
        return 8
    return h


def preact(x, scale1, shift1, th):
    b, h, w, cin = x.shape
    return pl.pallas_call(
        _preact_kernel,
        out_shape=jax.ShapeDtypeStruct((b, h, w, cin), _ACT_DTYPE),
        grid=(b, h // th),
        in_specs=[
            pl.BlockSpec((1, th, w, cin), lambda bi, i: (bi, i, 0, 0)),
            pl.BlockSpec((1, cin), lambda bi, i: (0, 0)),
            pl.BlockSpec((1, cin), lambda bi, i: (0, 0)),
        ],
        out_specs=pl.BlockSpec((1, th, w, cin), lambda bi, i: (bi, i, 0, 0)),
        compiler_params=_compiler_params(),
    )(x, scale1, shift1)


def preact_shortcut(x, scale1, shift1, wsc, bsc, th):
    b, h, w, cin = x.shape
    cout = wsc.shape[1]
    return pl.pallas_call(
        _preact_shortcut_kernel,
        out_shape=(jax.ShapeDtypeStruct((b, h, w, cin), _ACT_DTYPE),
                   jax.ShapeDtypeStruct((b, h, w, cout), jnp.float32)),
        grid=(b, h // th),
        in_specs=[
            pl.BlockSpec((1, th, w, cin), lambda bi, i: (bi, i, 0, 0)),
            pl.BlockSpec((1, cin), lambda bi, i: (0, 0)),
            pl.BlockSpec((1, cin), lambda bi, i: (0, 0)),
            pl.BlockSpec((cin, cout), lambda bi, i: (0, 0)),
            pl.BlockSpec((1, cout), lambda bi, i: (0, 0)),
        ],
        out_specs=(
            pl.BlockSpec((1, th, w, cin), lambda bi, i: (bi, i, 0, 0)),
            pl.BlockSpec((1, th, w, cout), lambda bi, i: (bi, i, 0, 0)),
        ),
        compiler_params=_compiler_params(),
    )(x, scale1, shift1, wsc, bsc)


def conv3x3_bn_relu(xpad, w_flat, scale, shift, th):
    b, hp, wp, cin = xpad.shape
    h, w = hp - 2, wp - 2
    cout = w_flat.shape[1]
    flops = 2 * b * h * w * w_flat.shape[0] * cout
    bytes_accessed = (xpad.size * xpad.dtype.itemsize
                      + w_flat.size * w_flat.dtype.itemsize
                      + b * h * w * cout * np.dtype(_ACT_DTYPE).itemsize)
    return pl.pallas_call(
        _conv3x3_bn_relu_kernel,
        out_shape=jax.ShapeDtypeStruct((b, h, w, cout), _ACT_DTYPE),
        grid=(b, h // th),
        in_specs=[
            # Whole padded sample; constant block index along the tile axis keeps it
            # resident in VMEM across the H tiles of one batch element (halo is
            # sliced in-kernel -> no materialized im2col / duplicated HBM traffic).
            pl.BlockSpec((1, hp, wp, cin), lambda bi, i: (bi, 0, 0, 0)),
            pl.BlockSpec((9 * cin, cout), lambda bi, i: (0, 0)),
            pl.BlockSpec((1, cout), lambda bi, i: (0, 0)),
            pl.BlockSpec((1, cout), lambda bi, i: (0, 0)),
        ],
        out_specs=pl.BlockSpec((1, th, w, cout), lambda bi, i: (bi, i, 0, 0)),
        compiler_params=_compiler_params(),
        cost_estimate=pl.CostEstimate(flops=flops, transcendentals=0,
                                      bytes_accessed=bytes_accessed),
    )(xpad, w_flat, scale, shift)


def conv3x3_add(xpad, w_flat, res, th):
    b, hp, wp, cin = xpad.shape
    h, w = hp - 2, wp - 2
    cout = w_flat.shape[1]
    flops = 2 * b * h * w * w_flat.shape[0] * cout
    bytes_accessed = (xpad.size * xpad.dtype.itemsize
                      + w_flat.size * w_flat.dtype.itemsize
                      + res.size * res.dtype.itemsize
                      + b * h * w * cout * 4)
    return pl.pallas_call(
        _conv3x3_add_kernel,
        out_shape=jax.ShapeDtypeStruct((b, h, w, cout), jnp.float32),
        grid=(b, h // th),
        in_specs=[
            pl.BlockSpec((1, hp, wp, cin), lambda bi, i: (bi, 0, 0, 0)),
            pl.BlockSpec((9 * cin, cout), lambda bi, i: (0, 0)),
            pl.BlockSpec((1, th, w, cout), lambda bi, i: (bi, i, 0, 0)),
        ],
        out_specs=pl.BlockSpec((1, th, w, cout), lambda bi, i: (bi, i, 0, 0)),
        compiler_params=_compiler_params(),
        cost_estimate=pl.CostEstimate(flops=flops, transcendentals=0,
                                      bytes_accessed=bytes_accessed),
    )(xpad, w_flat, res)


# ---------------------------------------------------------------------------
# Forward pass glue (layout, BN folding, padding)
# ---------------------------------------------------------------------------

def _fold_bn(bn):
    """Eval-mode BatchNorm -> per-channel (scale, shift)."""
    scale = bn['gamma'] / jnp.sqrt(bn['var'] + bn['eps'])
    shift = bn['beta'] - bn['mean'] * scale
    return (scale.reshape(1, -1).astype(jnp.float32),
            shift.reshape(1, -1).astype(jnp.float32))


def preact_resblock_forward(params, x_nchw):
    """Matches PreactResBlock.forward (stride=1, eval-mode BN, no SE / bottleneck)."""
    b, cin, h, w = x_nchw.shape
    cout = params['conv1_w'].shape[-1]
    x = jnp.transpose(x_nchw, (0, 2, 3, 1)).astype(jnp.float32)   # NHWC
    th = _pick_row_tile(h)

    s1, t1 = _fold_bn(params['bn1'])
    s2, t2 = _fold_bn(params['bn2'])

    if cin != cout:
        # len(shortcut) > 0 branch: out = shortcut(h) + branch[2:](h)
        hh, res = preact_shortcut(
            x, s1, t1,
            params['sc_w'].astype(_MATMUL_DTYPE),
            params['sc_b'].reshape(1, -1).astype(jnp.float32), th)
    else:
        # identity branch: out = x + branch(x)
        hh = preact(x, s1, t1, th)
        res = x

    w1 = params['conv1_w'].reshape(9 * cin, cout).astype(_MATMUL_DTYPE)
    w2 = params['conv2_w'].reshape(9 * cout, cout).astype(_MATMUL_DTYPE)

    hp = jnp.pad(hh, ((0, 0), (1, 1), (1, 1), (0, 0)))            # zero pad AFTER relu
    bb = conv3x3_bn_relu(hp, w1, s2, t2, th)
    bp = jnp.pad(bb, ((0, 0), (1, 1), (1, 1), (0, 0)))
    out = conv3x3_add(bp, w2, res, th)
    return jnp.transpose(out, (0, 3, 1, 2))                       # back to NCHW


# ---------------------------------------------------------------------------
# Parameter init + NumPy (float64) reference of the PyTorch math
# ---------------------------------------------------------------------------

def init_params(key, in_ch, out_ch):
    ks = jax.random.split(key, 8)

    def bn_params(k, c):
        k1, k2, k3, k4 = jax.random.split(k, 4)
        return dict(gamma=jax.random.uniform(k1, (c,), jnp.float32, 0.5, 1.5),
                    beta=0.2 * jax.random.normal(k2, (c,), jnp.float32),
                    mean=0.2 * jax.random.normal(k3, (c,), jnp.float32),
                    var=jax.random.uniform(k4, (c,), jnp.float32, 0.5, 1.5),
                    eps=1e-5)

    # kaiming-normal (fan_in, relu) like torchelie's kaiming(Conv3x3(...)); NOTE the
    # PyTorch module uses constant_init(conv2, 0) — random weights are used here so
    # the test exercises the full compute path instead of a trivial zero branch.
    conv1_w = jax.random.normal(ks[0], (3, 3, in_ch, out_ch), jnp.float32) \
        * math.sqrt(2.0 / (9 * in_ch))
    conv2_w = jax.random.normal(ks[1], (3, 3, out_ch, out_ch), jnp.float32) \
        * math.sqrt(2.0 / (9 * out_ch))
    p = dict(conv1_w=conv1_w, conv2_w=conv2_w,
             bn1=bn_params(ks[2], in_ch), bn2=bn_params(ks[3], out_ch))
    if in_ch != out_ch:
        p['sc_w'] = jax.random.normal(ks[4], (in_ch, out_ch), jnp.float32) \
            * math.sqrt(2.0 / in_ch)
        p['sc_b'] = 0.1 * jax.random.normal(ks[5], (out_ch,), jnp.float32)
    return p


def ref_forward_np(params, x_nchw):
    x = np.asarray(x_nchw, np.float64)                            # (B, Cin, H, W)
    cin = x.shape[1]
    cout = params['conv1_w'].shape[-1]

    def bn(v, p):
        g = np.asarray(p['gamma'], np.float64)
        be = np.asarray(p['beta'], np.float64)
        m = np.asarray(p['mean'], np.float64)
        var = np.asarray(p['var'], np.float64)
        sc = g / np.sqrt(var + p['eps'])
        sh = be - m * sc
        return v * sc[None, :, None, None] + sh[None, :, None, None]

    def conv3x3(v, wt):                                           # wt HWIO, pad=1
        bb, _, hh, ww = v.shape
        co = wt.shape[3]
        vp = np.pad(v, ((0, 0), (0, 0), (1, 1), (1, 1)))
        wt = np.asarray(wt, np.float64)
        out = np.zeros((bb, co, hh, ww))
        for kh in range(3):
            for kw in range(3):
                out += np.einsum('bihw,io->bohw',
                                 vp[:, :, kh:kh + hh, kw:kw + ww], wt[kh, kw])
        return out

    hmap = np.maximum(bn(x, params['bn1']), 0.0)
    a = conv3x3(hmap, params['conv1_w'])
    bmap = np.maximum(bn(a, params['bn2']), 0.0)
    c = conv3x3(bmap, params['conv2_w'])
    if cin != cout:
        scw = np.asarray(params['sc_w'], np.float64)
        scb = np.asarray(params['sc_b'], np.float64)
        res = np.einsum('bihw,io->bohw', hmap, scw) + scb[None, :, None, None]
    else:
        res = x
    return res + c


# ---------------------------------------------------------------------------

if __name__ == "__main__":
    key = jax.random.PRNGKey(0)
    kx1, kx2, kp1, kp2 = jax.random.split(key, 4)

    # Case 1: in_ch != out_ch  ->  projection (Conv1x1) shortcut branch.
    B, in_ch, out_ch, H, W = 2, 4, 8, 16, 16
    x1 = jax.random.normal(kx1, (B, in_ch, H, W), jnp.float32)
    params1 = init_params(kp1, in_ch, out_ch)
    out1 = preact_resblock_forward(params1, x1)
    jax.block_until_ready(out1)
    ref1 = ref_forward_np(params1, x1)
    assert out1.shape == (B, out_ch, H, W)
    # bf16 MXU operands (f32 accumulation) -> tolerance sized for bf16 rounding.
    assert np.allclose(np.asarray(out1), ref1, rtol=5e-2, atol=5e-2), \
        float(np.max(np.abs(np.asarray(out1) - ref1)))

    # Case 2: in_ch == out_ch  ->  identity shortcut branch (x + branch(x)).
    x2 = jax.random.normal(kx2, (B, out_ch, H, W), jnp.float32)
    params2 = init_params(kp2, out_ch, out_ch)
    out2 = preact_resblock_forward(params2, x2)
    jax.block_until_ready(out2)
    ref2 = ref_forward_np(params2, x2)
    assert out2.shape == (B, out_ch, H, W)
    assert np.allclose(np.asarray(out2), ref2, rtol=5e-2, atol=5e-2), \
        float(np.max(np.abs(np.asarray(out2) - ref2)))

    print("KERNEL_OK")
</pallas_src>

<mosaic_0001>
module attributes {stable_mosaic.version = 11 : i64} {
  func.func @_preact_shortcut_kernel(%arg0: i32, %arg1: i32, %arg2: memref<1x8x16x4xf32, #tpu.memory_space<vmem>>, %arg3: memref<1x4xf32, #tpu.memory_space<vmem>>, %arg4: memref<1x4xf32, #tpu.memory_space<vmem>>, %arg5: memref<4x8xbf16, #tpu.memory_space<vmem>>, %arg6: memref<1x8xf32, #tpu.memory_space<vmem>>, %arg7: memref<1x8x16x4xbf16, #tpu.memory_space<vmem>>, %arg8: memref<1x8x16x8xf32, #tpu.memory_space<vmem>>) attributes {dimension_semantics = [#tpu.dimension_semantics<parallel>, #tpu.dimension_semantics<parallel>], iteration_bounds = array<i64: 2, 2>, scalar_prefetch = 0 : i64, scratch_operands = 0 : i64, tpu.core_type = #tpu.core_type<tc>, window_params = [{transform_indices = @transform_0, window_bounds = array<i64: 1, 8, 16, 4>}, {pipeline_mode = #tpu.pipeline_mode<synchronous>, transform_indices = @transform_1, window_bounds = array<i64: 1, 4>}, {pipeline_mode = #tpu.pipeline_mode<synchronous>, transform_indices = @transform_2, window_bounds = array<i64: 1, 4>}, {pipeline_mode = #tpu.pipeline_mode<synchronous>, transform_indices = @transform_3, window_bounds = array<i64: 4, 8>}, {pipeline_mode = #tpu.pipeline_mode<synchronous>, transform_indices = @transform_4, window_bounds = array<i64: 1, 8>}, {transform_indices = @transform_5, window_bounds = array<i64: 1, 8, 16, 4>}, {transform_indices = @transform_6, window_bounds = array<i64: 1, 8, 16, 8>}]} {
    %c0 = arith.constant 0 : index
    %c0_0 = arith.constant 0 : index
    %c0_1 = arith.constant 0 : index
    %c0_2 = arith.constant 0 : index
    %0 = vector.load %arg2[%c0, %c0_0, %c0_1, %c0_2] : memref<1x8x16x4xf32, #tpu.memory_space<vmem>>, vector<1x8x16x4xf32>
    %1 = vector.shape_cast %0 : vector<1x8x16x4xf32> to vector<8x16x4xf32>
    %c0_3 = arith.constant 0 : index
    %c0_4 = arith.constant 0 : index
    %2 = vector.load %arg3[%c0_3, %c0_4] : memref<1x4xf32, #tpu.memory_space<vmem>>, vector<1x4xf32>
    %3 = vector.shape_cast %2 : vector<1x4xf32> to vector<1x1x4xf32>
    %4 = vector.broadcast %3 : vector<1x1x4xf32> to vector<8x16x4xf32>
    %5 = arith.mulf %1, %4 : vector<8x16x4xf32>
    %c0_5 = arith.constant 0 : index
    %c0_6 = arith.constant 0 : index
    %6 = vector.load %arg4[%c0_5, %c0_6] : memref<1x4xf32, #tpu.memory_space<vmem>>, vector<1x4xf32>
    %7 = vector.shape_cast %6 : vector<1x4xf32> to vector<1x1x4xf32>
    %8 = vector.broadcast %7 : vector<1x1x4xf32> to vector<8x16x4xf32>
    %9 = arith.addf %5, %8 : vector<8x16x4xf32>
    %cst = arith.constant 0.000000e+00 : f32
    %10 = vector.broadcast %cst : f32 to vector<8x16x4xf32>
    %11 = arith.maximumf %9, %10 : vector<8x16x4xf32>
    %12 = arith.truncf %11 : vector<8x16x4xf32> to vector<8x16x4xbf16>
    %c0_7 = arith.constant 0 : index
    %c0_8 = arith.constant 0 : index
    %c0_9 = arith.constant 0 : index
    %c0_10 = arith.constant 0 : index
    %13 = vector.load %arg7[%c0_7, %c0_8, %c0_9, %c0_10] : memref<1x8x16x4xbf16, #tpu.memory_space<vmem>>, vector<1x8x16x4xbf16>
    %14 = vector.shape_cast %13 : vector<1x8x16x4xbf16> to vector<8x16x4xbf16>
    %15 = vector.shape_cast %12 : vector<8x16x4xbf16> to vector<1x8x16x4xbf16>
    tpu.vector_store %arg7[%c0_7, %c0_8, %c0_9, %c0_10], %15 {strides = array<i32>} : memref<1x8x16x4xbf16, #tpu.memory_space<vmem>>, vector<1x8x16x4xbf16>,
    %16 = vector.shape_cast %11 : vector<8x16x4xf32> to vector<128x4xf32>
    %17 = arith.truncf %16 : vector<128x4xf32> to vector<128x4xbf16>
    %c0_11 = arith.constant 0 : index
    %c0_12 = arith.constant 0 : index
    %18 = vector.load %arg5[%c0_11, %c0_12] : memref<4x8xbf16, #tpu.memory_space<vmem>>, vector<4x8xbf16>
    %cst_13 = arith.constant dense<0.000000e+00> : vector<128x8xf32>
    %19 = tpu.matmul %17, %18, %cst_13 {dimension_numbers = #tpu.dot_dimension_numbers<[1], [0], [0], [1], [0, 0, 1, 1], [], []>} : vector<128x4xbf16>, vector<4x8xbf16>, vector<128x8xf32> -> vector<128x8xf32>
    %20 = vector.shape_cast %19 : vector<128x8xf32> to vector<8x16x8xf32>
    %c0_14 = arith.constant 0 : index
    %c0_15 = arith.constant 0 : index
    %21 = vector.load %arg6[%c0_14, %c0_15] : memref<1x8xf32, #tpu.memory_space<vmem>>, vector<1x8xf32>
    %22 = vector.shape_cast %21 : vector<1x8xf32> to vector<1x1x8xf32>
    %23 = vector.broadcast %22 : vector<1x1x8xf32> to vector<8x16x8xf32>
    %24 = arith.addf %20, %23 : vector<8x16x8xf32>
    %c0_16 = arith.constant 0 : index
    %c0_17 = arith.constant 0 : index
    %c0_18 = arith.constant 0 : index
    %c0_19 = arith.constant 0 : index
    %25 = vector.load %arg8[%c0_16, %c0_17, %c0_18, %c0_19] : memref<1x8x16x8xf32, #tpu.memory_space<vmem>>, vector<1x8x16x8xf32>
    %26 = vector.shape_cast %25 : vector<1x8x16x8xf32> to vector<8x16x8xf32>
    %27 = vector.shape_cast %24 : vector<8x16x8xf32> to vector<1x8x16x8xf32>
    tpu.vector_store %arg8[%c0_16, %c0_17, %c0_18, %c0_19], %27 {strides = array<i32>} : memref<1x8x16x8xf32, #tpu.memory_space<vmem>>, vector<1x8x16x8xf32>,
    return
  }
  func.func @transform_0(%arg0: i32, %arg1: i32) -> (i32, i32, i32, i32) {
    %c0_i32 = arith.constant 0 : i32
    %c0_i32_0 = arith.constant 0 : i32
    %c0_i32_1 = arith.constant 0 : i32
    return %arg0, %arg1, %c0_i32, %c0_i32_0 : i32, i32, i32, i32
  }
  func.func @transform_1(%arg0: i32, %arg1: i32) -> (i32, i32) {
    %c0_i32 = arith.constant 0 : i32
    %c0_i32_0 = arith.constant 0 : i32
    %c0_i32_1 = arith.constant 0 : i32
    return %c0_i32, %c0_i32_0 : i32, i32
  }
  func.func @transform_2(%arg0: i32, %arg1: i32) -> (i32, i32) {
    %c0_i32 = arith.constant 0 : i32
    %c0_i32_0 = arith.constant 0 : i32
    %c0_i32_1 = arith.constant 0 : i32
    return %c0_i32, %c0_i32_0 : i32, i32
  }
  func.func @transform_3(%arg0: i32, %arg1: i32) -> (i32, i32) {
    %c0_i32 = arith.constant 0 : i32
    %c0_i32_0 = arith.constant 0 : i32
    %c0_i32_1 = arith.constant 0 : i32
    return %c0_i32, %c0_i32_0 : i32, i32
  }
  func.func @transform_4(%arg0: i32, %arg1: i32) -> (i32, i32) {
    %c0_i32 = arith.constant 0 : i32
    %c0_i32_0 = arith.constant 0 : i32
    %c0_i32_1 = arith.constant 0 : i32
    return %c0_i32, %c0_i32_0 : i32, i32
  }
  func.func @transform_5(%arg0: i32, %arg1: i32) -> (i32, i32, i32, i32) {
    %c0_i32 = arith.constant 0 : i32
    %c0_i32_0 = arith.constant 0 : i32
    %c0_i32_1 = arith.constant 0 : i32
    return %arg0, %arg1, %c0_i32, %c0_i32_0 : i32, i32, i32, i32
  }
  func.func @transform_6(%arg0: i32, %arg1: i32) -> (i32, i32, i32, i32) {
    %c0_i32 = arith.constant 0 : i32
    %c0_i32_0 = arith.constant 0 : i32
    %c0_i32_1 = arith.constant 0 : i32
    return %arg0, %arg1, %c0_i32, %c0_i32_0 : i32, i32, i32, i32
  }
}

</mosaic_0001>

<llo_original>
// kernel: tpu_custom_call.1
$region0: #{tpu_custom_call.1}
  #allocation0 [shape = 'u32[]', space=smem, size = 0x4, offset = 0x4, fixed_abs, tag = 'smem constant byte address 0x4 - core index']
  #allocation1 [shape = 'u32[144,128]{1,0:T(1,128)}', space=vmem, size = 0x12000, scoped, tag = 'internal scratch']
  %s0 = inlined_call_operand.vmem [shape: f32[2,16,16,4], index: 0, kind: input, shape index: {}]
  %s1 = inlined_call_operand.vmem [shape: f32[1,4], index: 1, kind: input, shape index: {}]
  %s2 = inlined_call_operand.vmem [shape: f32[1,4], index: 2, kind: input, shape index: {}]
  %s3 = inlined_call_operand.vmem [shape: bf16[4,8], index: 3, kind: input, shape index: {}]
  %s4 = inlined_call_operand.vmem [shape: f32[1,8], index: 4, kind: input, shape index: {}]
  %s5 = inlined_call_operand.vmem [shape: bf16[2,16,16,4], index: 5, kind: output, shape index: {0}]
  %s6 = inlined_call_operand.vmem [shape: f32[2,16,16,8], index: 6, kind: output, shape index: {1}]
  %7 = xla_tuple %s5, %s6
  %s8 = sld [smem:[#allocation0]]
  $region61: #{tpu_custom_call.1} parent=0
    _
  %s10 = ssub.s32 1, %s8
  %s11 = scalar_select 0, %s10, %s8
  loop: start=0, step=1, limit=6
  $region2: #{tpu_custom_call.1} parent=0 // loop_pre_header
    _
  $region3: #{tpu_custom_call.1} parent=0 // loop_header
    %s13 = sphi 0, %s17
    %p14 = scmp.ge.s32.totalorder %s13, 6
    %s20 = sphi 0, %s32
    %s21 = sphi 0, %s28
    %s22 = sphi 0, %s20
    %s23 = sphi 0, %s21
    %s24 = sphi 0, %s22
    %s25 = sphi 0, %s23
    %s37 = sphi 0, %s39
    %s40 = sphi 0, %s37
    %s41 = sphi 0, %s40
    %s57 = sphi 0, %s41
    %s61 = sphi 0, %s61
    %s63 = sphi 0, %s61
    %s64 = sphi 0, %s63
    %s78 = sphi 0, %s64
    %s82 = sphi 0, %s82
    %s84 = sphi 0, %s82
    %s85 = sphi 0, %s84
    %s99 = sphi 0, %s85
    %s103 = sphi 0, %s103
    %s105 = sphi 0, %s103
    %s106 = sphi 0, %s105
    %s120 = sphi 0, %s106
    %s124 = sphi 0, %s124
    %s126 = sphi 0, %s124
    %s127 = sphi 0, %s126
    %s141 = sphi 0, %s127
    %s149 = sphi 0, %s151
    %s152 = sphi 0, %s149
    %s153 = sphi 0, %s152
    %s169 = sphi 0, %s153
    %s177 = sphi 0, %s179
    %s180 = sphi 0, %s177
    %s181 = sphi 0, %s180
    %s197 = sphi 0, %s181
  $region4: #{tpu_custom_call.1} parent=0 // loop_header_branch
    %16 = sbr.rel (%p14) target = $region8
  $region5: #{tpu_custom_call.1} parent=0 // loop_body
    %s18 = ssub.s32 %s13, 1
    %s19 = ssub.s32 %s13, 2
    %s26 = sadd.s32 1, %s21
    %p27 = scmp.ge.s32.totalorder %s26, 2
    %s28 = scalar_select %p27, 0, %s26
    %s29 = sadd.s32 1, %s20
    %s30 = scalar_select %p27, %s29, %s20
    %p31 = scmp.ge.s32.totalorder %s30, 2
    %s32 = scalar_select %p31, 0, %s30
    %s33 = ssub.s32 %s20, %s32
    %s34 = ssub.s32 %s21, %s28
    %s35 = sor.u32 %s33, %s34
    %p36 = scmp.eq.s32.totalorder %s35, 0
    %s38 = sadd.s32 %s37, 1
    %s39 = scalar_select %p36, %s37, %s38
    %p42 = pneg %p36
    %p43 = scmp.eq.s32.totalorder %s13, 3
    %p44 = por %p42, %p43
    %p45 = scmp.ne.s32.totalorder %s37, %s40
    %p46 = scmp.eq.s32.totalorder %s13, 0
    %p47 = por %p45, %p46
    %p48 = scmp.ne.s32.totalorder %s37, %s40
    %p49 = scmp.eq.s32.totalorder %s18, 3
    %p50 = por %p48, %p49
    %p51 = scmp.ne.s32.totalorder %s40, %s41
    %p52 = scmp.eq.s32.totalorder %s18, 0
    %p53 = por %p51, %p52
    %p54 = scmp.ne.s32.totalorder %s40, %s41
    %p55 = scmp.eq.s32.totalorder %s19, 3
    %p56 = por %p54, %p55
    %p58 = scmp.ne.s32.totalorder %s41, %s57
    %p59 = scmp.eq.s32.totalorder %s19, 0
    %p60 = por %p58, %p59
    %s62 = sadd.s32 %s61, 1
    %p65 = scmp.eq.s32.totalorder %s13, 3
    %p66 = scmp.ne.s32.totalorder %s61, %s63
    %p67 = scmp.eq.s32.totalorder %s13, 0
    %p68 = por %p66, %p67
    %p69 = scmp.ne.s32.totalorder %s61, %s63
    %p70 = scmp.eq.s32.totalorder %s18, 3
    %p71 = por %p69, %p70
    %p72 = scmp.ne.s32.totalorder %s63, %s64
    %p73 = scmp.eq.s32.totalorder %s18, 0
    %p74 = por %p72, %p73
    %p75 = scmp.ne.s32.totalorder %s63, %s64
    %p76 = scmp.eq.s32.totalorder %s19, 3
    %p77 = por %p75, %p76
    %p79 = scmp.ne.s32.totalorder %s64, %s78
    %p80 = scmp.eq.s32.totalorder %s19, 0
    %p81 = por %p79, %p80
    %s83 = sadd.s32 %s82, 1
    %p86 = scmp.eq.s32.totalorder %s13, 3
    %p87 = scmp.ne.s32.totalorder %s82, %s84
    %p88 = scmp.eq.s32.totalorder %s13, 0
    %p89 = por %p87, %p88
    %p90 = scmp.ne.s32.totalorder %s82, %s84
    %p91 = scmp.eq.s32.totalorder %s18, 3
    %p92 = por %p90, %p91
    %p93 = scmp.ne.s32.totalorder %s84, %s85
    %p94 = scmp.eq.s32.totalorder %s18, 0
    %p95 = por %p93, %p94
    %p96 = scmp.ne.s32.totalorder %s84, %s85
    %p97 = scmp.eq.s32.totalorder %s19, 3
    %p98 = por %p96, %p97
    %p100 = scmp.ne.s32.totalorder %s85, %s99
    %p101 = scmp.eq.s32.totalorder %s19, 0
    %p102 = por %p100, %p101
    %s104 = sadd.s32 %s103, 1
    %p107 = scmp.eq.s32.totalorder %s13, 3
    %p108 = scmp.ne.s32.totalorder %s103, %s105
    %p109 = scmp.eq.s32.totalorder %s13, 0
    %p110 = por %p108, %p109
    %p111 = scmp.ne.s32.totalorder %s103, %s105
    %p112 = scmp.eq.s32.totalorder %s18, 3
    %p113 = por %p111, %p112
    %p114 = scmp.ne.s32.totalorder %s105, %s106
    %p115 = scmp.eq.s32.totalorder %s18, 0
    %p116 = por %p114, %p115
    %p117 = scmp.ne.s32.totalorder %s105, %s106
    %p118 = scmp.eq.s32.totalorder %s19, 3
    %p119 = por %p117, %p118
    %p121 = scmp.ne.s32.totalorder %s106, %s120
    %p122 = scmp.eq.s32.totalorder %s19, 0
    %p123 = por %p121, %p122
    %s125 = sadd.s32 %s124, 1
    %p128 = scmp.eq.s32.totalorder %s13, 3
    %p129 = scmp.ne.s32.totalorder %s124, %s126
    %p130 = scmp.eq.s32.totalorder %s13, 0
    %p131 = por %p129, %p130
    %p132 = scmp.ne.s32.totalorder %s124, %s126
    %p133 = scmp.eq.s32.totalorder %s18, 3
    %p134 = por %p132, %p133
    %p135 = scmp.ne.s32.totalorder %s126, %s127
    %p136 = scmp.eq.s32.totalorder %s18, 0
    %p137 = por %p135, %p136
    %p138 = scmp.ne.s32.totalorder %s126, %s127
    %p139 = scmp.eq.s32.totalorder %s19, 3
    %p140 = por %p138, %p139
    %p142 = scmp.ne.s32.totalorder %s127, %s141
    %p143 = scmp.eq.s32.totalorder %s19, 0
    %p144 = por %p142, %p143
    %s145 = ssub.s32 %s20, %s32
    %s146 = ssub.s32 %s21, %s28
    %s147 = sor.u32 %s145, %s146
    %p148 = scmp.eq.s32.totalorder %s147, 0
    %s150 = sadd.s32 %s149, 1
    %s151 = scalar_select %p148, %s149, %s150
    %p154 = pneg %p148
    %p155 = scmp.eq.s32.totalorder %s13, 3
    %p156 = por %p154, %p155
    %p157 = scmp.ne.s32.totalorder %s149, %s152
    %p158 = scmp.eq.s32.totalorder %s13, 0
    %p159 = por %p157, %p158
    %p160 = scmp.ne.s32.totalorder %s149, %s152
    %p161 = scmp.eq.s32.totalorder %s18, 3
    %p162 = por %p160, %p161
    %p163 = scmp.ne.s32.totalorder %s152, %s153
    %p164 = scmp.eq.s32.totalorder %s18, 0
    %p165 = por %p163, %p164
    %p166 = scmp.ne.s32.totalorder %s152, %s153
    %p167 = scmp.eq.s32.totalorder %s19, 3
    %p168 = por %p166, %p167
    %p170 = scmp.ne.s32.totalorder %s153, %s169
    %p171 = scmp.eq.s32.totalorder %s19, 0
    %p172 = por %p170, %p171
    %s173 = ssub.s32 %s20, %s32
    %s174 = ssub.s32 %s21, %s28
    %s175 = sor.u32 %s173, %s174
    %p176 = scmp.eq.s32.totalorder %s175, 0
    %s178 = sadd.s32 %s177, 1
    %s179 = scalar_select %p176, %s177, %s178
    %p182 = pneg %p176
    %p183 = scmp.eq.s32.totalorder %s13, 3
    %p184 = por %p182, %p183
    %p185 = scmp.ne.s32.totalorder %s177, %s180
    %p186 = scmp.eq.s32.totalorder %s13, 0
    %p187 = por %p185, %p186
    %p188 = scmp.ne.s32.totalorder %s177, %s180
    %p189 = scmp.eq.s32.totalorder %s18, 3
    %p190 = por %p188, %p189
    %p191 = scmp.ne.s32.totalorder %s180, %s181
    %p192 = scmp.eq.s32.totalorder %s18, 0
    %p193 = por %p191, %p192
    %p194 = scmp.ne.s32.totalorder %s180, %s181
    %p195 = scmp.eq.s32.totalorder %s19, 3
    %p196 = por %p194, %p195
    %p198 = scmp.ne.s32.totalorder %s181, %s197
    %p199 = scmp.eq.s32.totalorder %s19, 0
    %p200 = por %p198, %p199
    %p201 = scmp.le.s32.totalorder 1, %s13
    %p202 = scmp.lt.s32.totalorder %s13, 5
    %p203 = pnand %p201, %p202
    %p204 = pneg %p203
    // Predicated region
    $region9: #{tpu_custom_call.1} parent=5 // pred_check
      _
    $region10: #{tpu_custom_call.1} parent=5 // pred_check_branch
      %206 = sbr.rel (%p203) target = $region12
    $region11: #{tpu_custom_call.1} parent=5 // pred_region
      %s207 = ssub.s32 %s13, 1
      // Predicated region
      $region13: #{tpu_custom_call.1} parent=11 // pred_check
        %p208 = pneg %p74
      $region14: #{tpu_custom_call.1} parent=11 // pred_check_branch
        %210 = sbr.rel (%p208) target = $region16
      $region15: #{tpu_custom_call.1} parent=11 // pred_region
        _
      $region16: #{tpu_custom_call.1} parent=11 // pred_fallthru
        _
      // Predicated region
      $region17: #{tpu_custom_call.1} parent=11 // pred_check
        %p211 = pneg %p95
      $region18: #{tpu_custom_call.1} parent=11 // pred_check_branch
        %213 = sbr.rel (%p211) target = $region20
      $region19: #{tpu_custom_call.1} parent=11 // pred_region
        _
      $region20: #{tpu_custom_call.1} parent=11 // pred_fallthru
        _
      // Predicated region
      $region21: #{tpu_custom_call.1} parent=11 // pred_check
        %p214 = pneg %p116
      $region22: #{tpu_custom_call.1} parent=11 // pred_check_branch
        %216 = sbr.rel (%p214) target = $region24
      $region23: #{tpu_custom_call.1} parent=11 // pred_region
        _
      $region24: #{tpu_custom_call.1} parent=11 // pred_fallthru
        _
      // Predicated region
      $region25: #{tpu_custom_call.1} parent=11 // pred_check
        %p217 = pneg %p137
      $region26: #{tpu_custom_call.1} parent=11 // pred_check_branch
        %219 = sbr.rel (%p217) target = $region28
      $region27: #{tpu_custom_call.1} parent=11 // pred_region
        _
      $region28: #{tpu_custom_call.1} parent=11 // pred_fallthru
        _
    $region12: #{tpu_custom_call.1} parent=5 // pred_fallthru
      _
    %p220 = scmp.lt.s32.totalorder %s13, 4
    // Predicated region
    $region29: #{tpu_custom_call.1} parent=5 // pred_check
      %p221 = pneg %p220
    $region30: #{tpu_custom_call.1} parent=5 // pred_check_branch
      %223 = sbr.rel (%p221) target = $region32
    $region31: #{tpu_custom_call.1} parent=5 // pred_region
      // Predicated region
      $region33: #{tpu_custom_call.1} parent=31 // pred_check
        %p224 = pneg %p47
      $region34: #{tpu_custom_call.1} parent=31 // pred_check_branch
        %226 = sbr.rel (%p224) target = $region36
      $region35: #{tpu_custom_call.1} parent=31 // pred_region
        %s227 = smul.u32 8, %s21
        %p228 = scmp.lt.s32.totalorder %s20, 1
        %s229 = scalar_select %p228, %s20, 1
        %p230 = scmp.lt.s32.totalorder %s227, 15
        %s231 = scalar_select %p230, %s227, 15
        %s232 = smul.addr %s231, 2
        %s233 = smul.addr %s229, 32
        %s234 = sadd.s32 %s232, %s233
        %s235 = smul.addr %s234, 8
        %s236 = scalar_lea.vmem %s0, %s235
        %s237 = smul.u32 8, %s21
      $region36: #{tpu_custom_call.1} parent=31 // pred_fallthru
        _
    $region32: #{tpu_custom_call.1} parent=5 // pred_fallthru
      _
    %p238 = scmp.le.s32.totalorder 1, %s13
    %p239 = scmp.lt.s32.totalorder %s13, 5
    %p240 = pnand %p238, %p239
    %p241 = pneg %p240
    // Predicated region
    $region37: #{tpu_custom_call.1} parent=5 // pred_check
      _
    $region38: #{tpu_custom_call.1} parent=5 // pred_check_branch
      %243 = sbr.rel (%p240) target = $region40
    $region39: #{tpu_custom_call.1} parent=5 // pred_region
      %s244 = ssub.s32 %s13, 1
      %s245 = smul.u32 8, %s23
      %p246 = scmp.lt.s32.totalorder %s22, 1
      %s247 = scalar_select %p246, %s22, 1
      %p248 = scmp.lt.s32.totalorder %s245, 15
      %s249 = scalar_select %p248, %s245, 15
      %s250 = smul.addr %s249, 2
      %s251 = smul.addr %s247, 32
      %s252 = sadd.s32 %s250, %s251
      %s253 = smul.addr %s252, 8
      %s254 = scalar_lea.vmem %s0, %s253
      %p255 = pneg %p53
      %p256 = pneg %p50
      %p257 = pneg %p74
      %p258 = pneg %p71
      %p259 = pneg %p95
      %p260 = pneg %p92
      %p261 = pneg %p116
      %p262 = pneg %p113
      %p263 = pneg %p137
      %p264 = pneg %p134
      %p265 = pneg %p165
      %p266 = pneg %p162
      %s267 = smul.u32 8, %s23
      %p268 = scmp.lt.s32.totalorder %s22, 1
      %s269 = scalar_select %p268, %s22, 1
      %p270 = scmp.lt.s32.totalorder %s267, 15
      %s271 = scalar_select %p270, %s267, 15
      %s272 = smul.addr %s271, 2
      %s273 = smul.addr %s269, 32
      %s274 = sadd.s32 %s272, %s273
      %s275 = smul.addr %s274, 4
      %s276 = scalar_lea.vmem %s5, %s275
      %p277 = pneg %p193
      %p278 = pneg %p190
      %s279 = smul.u32 8, %s23
      %p280 = scmp.lt.s32.totalorder %s22, 1
      %s281 = scalar_select %p280, %s22, 1
      %p282 = scmp.lt.s32.totalorder %s279, 15
      %s283 = scalar_select %p282, %s279, 15
      %s284 = smul.addr %s283, 2
      %s285 = smul.addr %s281, 32
      %s286 = sadd.s32 %s284, %s285
      %s287 = smul.addr %s286, 8
      %s288 = scalar_lea.vmem %s6, %s287
      %s289 = smul.u32 8, %s23
      %p290 = scmp.lt.s32.totalorder %s22, 1
      %s291 = scalar_select %p290, %s22, 1
      %p292 = scmp.lt.s32.totalorder %s289, 15
      %s293 = scalar_select %p292, %s289, 15
      %s294 = smul.addr %s293, 2
      %s295 = smul.addr %s291, 32
      %s296 = sadd.s32 %s294, %s295
      %s297 = smul.addr %s296, 8
      %s298 = scalar_lea.vmem %s0, %s297
      %s299 = smul.u32 8, %s23
      %s300 = smul.u32 8, %s23
      %p301 = scmp.lt.s32.totalorder %s22, 1
      %s302 = scalar_select %p301, %s22, 1
      %p303 = scmp.lt.s32.totalorder %s300, 15
      %s304 = scalar_select %p303, %s300, 15
      %s305 = smul.addr %s304, 2
      %s306 = smul.addr %s302, 32
      %s307 = sadd.s32 %s305, %s306
      %s308 = smul.addr %s307, 4
      %s309 = scalar_lea.vmem %s5, %s308
      %s310 = smul.u32 8, %s23
      %s311 = smul.u32 8, %s23
      %p312 = scmp.lt.s32.totalorder %s22, 1
      %s313 = scalar_select %p312, %s22, 1
      %p314 = scmp.lt.s32.totalorder %s311, 15
      %s315 = scalar_select %p314, %s311, 15
      %s316 = smul.addr %s315, 2
      %s317 = smul.addr %s313, 32
      %s318 = sadd.s32 %s316, %s317
      %s319 = smul.addr %s318, 8
      %s320 = scalar_lea.vmem %s6, %s319
      %s321 = smul.u32 8, %s23
      %v323 = vld [vmem:[%s298] sm:$0xff]
      %v324 = vld [vmem:[%s298 + $0x8] sm:$0xff]
      %v325 = vld [vmem:[%s298 + $0x10] sm:$0xff]
      %v326 = vld [vmem:[%s298 + $0x18] sm:$0xff]
      %v327 = vld [vmem:[%s298 + $0x20] sm:$0xff]
      %v328 = vld [vmem:[%s298 + $0x28] sm:$0xff]
      %v329 = vld [vmem:[%s298 + $0x30] sm:$0xff]
      %v330 = vld [vmem:[%s298 + $0x38] sm:$0xff]
      %v331 = vld [vmem:[%s298 + $0x40] sm:$0xff]
      %v332 = vld [vmem:[%s298 + $0x48] sm:$0xff]
      %v333 = vld [vmem:[%s298 + $0x50] sm:$0xff]
      %v334 = vld [vmem:[%s298 + $0x58] sm:$0xff]
      %v335 = vld [vmem:[%s298 + $0x60] sm:$0xff]
      %v336 = vld [vmem:[%s298 + $0x68] sm:$0xff]
      %v337 = vld [vmem:[%s298 + $0x70] sm:$0xff]
      %v338 = vld [vmem:[%s298 + $0x78] sm:$0xff]
      %v339 = vld [vmem:[%s1] sm:$0x1]
      %v341 = vlaneseq
      %v342 = vshrl.u32 %v341, 7
      %v343 = vsub.s32 0, %v342
      %v344 = vrot.slane %v339, %v343
      %v346 = vmul.f32 %v323, %v344
      %v347 = vmul.f32 %v324, %v344
      %v348 = vmul.f32 %v325, %v344
      %v349 = vmul.f32 %v326, %v344
      %v350 = vmul.f32 %v327, %v344
      %v351 = vmul.f32 %v328, %v344
      %v352 = vmul.f32 %v329, %v344
      %v353 = vmul.f32 %v330, %v344
      %v354 = vmul.f32 %v331, %v344
      %v355 = vmul.f32 %v332, %v344
      %v356 = vmul.f32 %v333, %v344
      %v357 = vmul.f32 %v334, %v344
      %v358 = vmul.f32 %v335, %v344
      %v359 = vmul.f32 %v336, %v344
      %v360 = vmul.f32 %v337, %v344
      %v361 = vmul.f32 %v338, %v344
      %v362 = vld [vmem:[%s2] sm:$0x1]
      %v364 = vlaneseq
      %v365 = vshrl.u32 %v364, 7
      %v366 = vsub.s32 0, %v365
      %v367 = vrot.slane %v362, %v366
      %v369 = vadd.f32 %v346, %v367
      %v370 = vadd.f32 %v347, %v367
      %v371 = vadd.f32 %v348, %v367
      %v372 = vadd.f32 %v349, %v367
      %v373 = vadd.f32 %v350, %v367
      %v374 = vadd.f32 %v351, %v367
      %v375 = vadd.f32 %v352, %v367
      %v376 = vadd.f32 %v353, %v367
      %v377 = vadd.f32 %v354, %v367
      %v378 = vadd.f32 %v355, %v367
      %v379 = vadd.f32 %v356, %v367
      %v380 = vadd.f32 %v357, %v367
      %v381 = vadd.f32 %v358, %v367
      %v382 = vadd.f32 %v359, %v367
      %v383 = vadd.f32 %v360, %v367
      %v384 = vadd.f32 %v361, %v367
      %v385 = vmax.f32 %v369, 0.0
      %v386 = vmax.f32 %v370, 0.0
      %v387 = vmax.f32 %v371, 0.0
      %v388 = vmax.f32 %v372, 0.0
      %v389 = vmax.f32 %v373, 0.0
      %v390 = vmax.f32 %v374, 0.0
      %v391 = vmax.f32 %v375, 0.0
      %v392 = vmax.f32 %v376, 0.0
      %v393 = vmax.f32 %v377, 0.0
      %v394 = vmax.f32 %v378, 0.0
      %v395 = vmax.f32 %v379, 0.0
      %v396 = vmax.f32 %v380, 0.0
      %v397 = vmax.f32 %v381, 0.0
      %v398 = vmax.f32 %v382, 0.0
      %v399 = vmax.f32 %v383, 0.0
      %v400 = vmax.f32 %v384, 0.0
      %v401 = vpack.c.bf16 %v386, %v385
      %v402 = vpack.c.bf16 %v388, %v387
      %v403 = vpack.c.bf16 %v390, %v389
      %v404 = vpack.c.bf16 %v392, %v391
      %v405 = vpack.c.bf16 %v394, %v393
      %v406 = vpack.c.bf16 %v396, %v395
      %v407 = vpack.c.bf16 %v398, %v397
      %v408 = vpack.c.bf16 %v400, %v399
      %v417 = vunpack.c.l.b16 %v401
      %v418 = vunpack.c.h.b16 %v401
      %v419 = vunpack.c.l.b16 %v402
      %v420 = vunpack.c.h.b16 %v402
      %v421 = vunpack.c.l.b16 %v403
      %v422 = vunpack.c.h.b16 %v403
      %v423 = vunpack.c.l.b16 %v404
      %v424 = vunpack.c.h.b16 %v404
      %v425 = vunpack.c.l.b16 %v405
      %v426 = vunpack.c.h.b16 %v405
      %v427 = vunpack.c.l.b16 %v406
      %v428 = vunpack.c.h.b16 %v406
      %v429 = vunpack.c.l.b16 %v407
      %v430 = vunpack.c.h.b16 %v407
      %v431 = vunpack.c.l.b16 %v408
      %v432 = vunpack.c.h.b16 %v408
      %v433 = vpack.c.b16 %v417, %v417
      %v434 = vpack.c.b16 %v418, %v418
      %v435 = vpack.c.b16 %v419, %v419
      %v436 = vpack.c.b16 %v420, %v420
      %v437 = vpack.c.b16 %v421, %v421
      %v438 = vpack.c.b16 %v422, %v422
      %v439 = vpack.c.b16 %v423, %v423
      %v440 = vpack.c.b16 %v424, %v424
      %v441 = vpack.c.b16 %v425, %v425
      %v442 = vpack.c.b16 %v426, %v426
      %v443 = vpack.c.b16 %v427, %v427
      %v444 = vpack.c.b16 %v428, %v428
      %v445 = vpack.c.b16 %v429, %v429
      %v446 = vpack.c.b16 %v430, %v430
      %v447 = vpack.c.b16 %v431, %v431
      %v448 = vpack.c.b16 %v432, %v432
      %vm465 = vcmask 27648
      %466 = vst.msk [vmem:[%s309] sm:$0xf] %vm465, %v433
      %467 = vst.msk [vmem:[%s309 + $0x4] sm:$0xf] %vm465, %v434
      %468 = vst.msk [vmem:[%s309 + $0x8] sm:$0xf] %vm465, %v435
      %469 = vst.msk [vmem:[%s309 + $0xc] sm:$0xf] %vm465, %v436
      %470 = vst.msk [vmem:[%s309 + $0x10] sm:$0xf] %vm465, %v437
      %471 = vst.msk [vmem:[%s309 + $0x14] sm:$0xf] %vm465, %v438
      %472 = vst.msk [vmem:[%s309 + $0x18] sm:$0xf] %vm465, %v439
      %473 = vst.msk [vmem:[%s309 + $0x1c] sm:$0xf] %vm465, %v440
      %474 = vst.msk [vmem:[%s309 + $0x20] sm:$0xf] %vm465, %v441
      %475 = vst.msk [vmem:[%s309 + $0x24] sm:$0xf] %vm465, %v442
      %476 = vst.msk [vmem:[%s309 + $0x28] sm:$0xf] %vm465, %v443
      %477 = vst.msk [vmem:[%s309 + $0x2c] sm:$0xf] %vm465, %v444
      %478 = vst.msk [vmem:[%s309 + $0x30] sm:$0xf] %vm465, %v445
      %479 = vst.msk [vmem:[%s309 + $0x34] sm:$0xf] %vm465, %v446
      %480 = vst.msk [vmem:[%s309 + $0x38] sm:$0xf] %vm465, %v447
      %481 = vst.msk [vmem:[%s309 + $0x3c] sm:$0xf] %vm465, %v448
      %v482 = vld [vmem:[%s3] sm:$0x3]
      %vm483 = vcmask 31744
      %v485 = vsel %vm483, %v401, 0
      %v488 = vsel %vm483, %v402, 0
      %v491 = vsel %vm483, %v403, 0
      %v494 = vsel %vm483, %v404, 0
      %v497 = vsel %vm483, %v405, 0
      %v500 = vsel %vm483, %v406, 0
      %v503 = vsel %vm483, %v407, 0
      %v506 = vsel %vm483, %v408, 0
      %vm508 = vcmask 1041408
      %v510 = vsel %vm508, %v482, 0
      %512 = vmatprep.subr.bf16.mxu0 0
      %513 = vmatpush1.bf16.msra.mxu0 %v510
      %514 = vmatprep.subr.bf16.mxu0 0
      %515 = vmatpush1.bf16.msra.mxu0 0
      %516 = vmatprep.subr.bf16.mxu0 0
      %517 = vmatpush1.bf16.msra.mxu0 0
      %518 = vmatprep.subr.bf16.mxu0 0
      %519 = vmatpush1.bf16.msra.mxu0 0
      %520 = vmatprep.subr.bf16.mxu0 0
      %521 = vmatpush1.bf16.msra.mxu0 0
      %522 = vmatprep.subr.bf16.mxu0 0
      %523 = vmatpush1.bf16.msra.mxu0 0
      %524 = vmatprep.subr.bf16.mxu0 0
      %525 = vmatpush1.bf16.msra.mxu0 0
      %526 = vmatprep.subr.bf16.mxu0 0
      %527 = vmatpush1.bf16.msra.mxu0 0
      %528 = vmatprep.subr.bf16.mxu0 0
      %529 = vmatpush1.bf16.msra.mxu0 0
      %530 = vmatprep.subr.bf16.mxu0 0
      %531 = vmatpush1.bf16.msra.mxu0 0
      %532 = vmatprep.subr.bf16.mxu0 0
      %533 = vmatpush1.bf16.msra.mxu0 0
      %534 = vmatprep.subr.bf16.mxu0 0
      %535 = vmatpush1.bf16.msra.mxu0 0
      %536 = vmatprep.subr.bf16.mxu0 0
      %537 = vmatpush1.bf16.msra.mxu0 0
      %538 = vmatprep.subr.bf16.mxu0 0
      %539 = vmatpush1.bf16.msra.mxu0 0
      %540 = vmatprep.subr.bf16.mxu0 0
      %541 = vmatpush1.bf16.msra.mxu0 0
      %542 = vmatprep.subr.bf16.mxu0 0
      %543 = vmatpush1.bf16.msra.mxu0 0
      %544 = vmatprep.mubr.bf16.mxu0 0
      %545 = vmatmul.mubr.bf16.gmra.mrb[0].mxu0 %v485
      %v546 = vpop.f32.mrb[0].mxu0
      %v547 = vadd.f32 0.0, %v546
      %v548 = vpop.f32.mrb[0].mxu0
      %v549 = vpop.f32.mrb[0].mxu0
      %v550 = vadd.f32 0.0, %v549
      %v551 = vpop.f32.mrb[0].mxu0
      %552 = vmatprep.mubr.bf16.mxu0 0
      %553 = vmatmul.mubr.bf16.gmra.mrb[0].mxu0 %v488
      %v554 = vpop.f32.mrb[0].mxu0
      %v555 = vadd.f32 0.0, %v554
      %v556 = vpop.f32.mrb[0].mxu0
      %v557 = vpop.f32.mrb[0].mxu0
      %v558 = vadd.f32 0.0, %v557
      %v559 = vpop.f32.mrb[0].mxu0
      %560 = vmatprep.mubr.bf16.mxu0 0
      %561 = vmatmul.mubr.bf16.gmra.mrb[0].mxu0 %v491
      %v562 = vpop.f32.mrb[0].mxu0
      %v563 = vadd.f32 0.0, %v562
      %v564 = vpop.f32.mrb[0].mxu0
      %v565 = vpop.f32.mrb[0].mxu0
      %v566 = vadd.f32 0.0, %v565
      %v567 = vpop.f32.mrb[0].mxu0
      %568 = vmatprep.mubr.bf16.mxu0 0
      %569 = vmatmul.mubr.bf16.gmra.mrb[0].mxu0 %v494
      %v570 = vpop.f32.mrb[0].mxu0
      %v571 = vadd.f32 0.0, %v570
      %v572 = vpop.f32.mrb[0].mxu0
      %v573 = vpop.f32.mrb[0].mxu0
      %v574 = vadd.f32 0.0, %v573
      %v575 = vpop.f32.mrb[0].mxu0
      %576 = vmatprep.mubr.bf16.mxu0 0
      %577 = vmatmul.mubr.bf16.gmra.mrb[0].mxu0 %v497
      %v578 = vpop.f32.mrb[0].mxu0
      %v579 = vadd.f32 0.0, %v578
      %v580 = vpop.f32.mrb[0].mxu0
      %v581 = vpop.f32.mrb[0].mxu0
      %v582 = vadd.f32 0.0, %v581
      %v583 = vpop.f32.mrb[0].mxu0
      %584 = vmatprep.mubr.bf16.mxu0 0
      %585 = vmatmul.mubr.bf16.gmra.mrb[0].mxu0 %v500
      %v586 = vpop.f32.mrb[0].mxu0
      %v587 = vadd.f32 0.0, %v586
      %v588 = vpop.f32.mrb[0].mxu0
      %v589 = vpop.f32.mrb[0].mxu0
      %v590 = vadd.f32 0.0, %v589
      %v591 = vpop.f32.mrb[0].mxu0
      %592 = vmatprep.mubr.bf16.mxu0 0
      %593 = vmatmul.mubr.bf16.gmra.mrb[0].mxu0 %v503
      %v594 = vpop.f32.mrb[0].mxu0
      %v595 = vadd.f32 0.0, %v594
      %v596 = vpop.f32.mrb[0].mxu0
      %v597 = vpop.f32.mrb[0].mxu0
      %v598 = vadd.f32 0.0, %v597
      %v599 = vpop.f32.mrb[0].mxu0
      %600 = vmatprep.mubr.bf16.mxu0 0
      %601 = vmatmul.mubr.bf16.gmra.mrb[0].mxu0 %v506
      %v602 = vpop.f32.mrb[0].mxu0
      %v603 = vadd.f32 0.0, %v602
      %v604 = vpop.f32.mrb[0].mxu0
      %v605 = vpop.f32.mrb[0].mxu0
      %v606 = vadd.f32 0.0, %v605
      %v607 = vpop.f32.mrb[0].mxu0
      %608 = vdwg.mxu0
      %v609 = vld [vmem:[%s4] sm:$0x1]
      %v611 = vlaneseq
      %v612 = vshrl.u32 %v611, 7
      %v613 = vsub.s32 0, %v612
      %v614 = vrot.slane %v609, %v613
      %v616 = vadd.f32 %v547, %v614
      %v617 = vadd.f32 %v550, %v614
      %v618 = vadd.f32 %v555, %v614
      %v619 = vadd.f32 %v558, %v614
      %v620 = vadd.f32 %v563, %v614
      %v621 = vadd.f32 %v566, %v614
      %v622 = vadd.f32 %v571, %v614
      %v623 = vadd.f32 %v574, %v614
      %v624 = vadd.f32 %v579, %v614
      %v625 = vadd.f32 %v582, %v614
      %v626 = vadd.f32 %v587, %v614
      %v627 = vadd.f32 %v590, %v614
      %v628 = vadd.f32 %v595, %v614
      %v629 = vadd.f32 %v598, %v614
      %v630 = vadd.f32 %v603, %v614
      %v631 = vadd.f32 %v606, %v614
      %vm632 = vcmask 64512
      %633 = vst.msk [vmem:[%s320] sm:$0xff] %vm632, %v616
      %634 = vst.msk [vmem:[%s320 + $0x8] sm:$0xff] %vm632, %v617
      %635 = vst.msk [vmem:[%s320 + $0x10] sm:$0xff] %vm632, %v618
      %636 = vst.msk [vmem:[%s320 + $0x18] sm:$0xff] %vm632, %v619
      %637 = vst.msk [vmem:[%s320 + $0x20] sm:$0xff] %vm632, %v620
      %638 = vst.msk [vmem:[%s320 + $0x28] sm:$0xff] %vm632, %v621
      %639 = vst.msk [vmem:[%s320 + $0x30] sm:$0xff] %vm632, %v622
      %640 = vst.msk [vmem:[%s320 + $0x38] sm:$0xff] %vm632, %v623
      %641 = vst.msk [vmem:[%s320 + $0x40] sm:$0xff] %vm632, %v624
      %642 = vst.msk [vmem:[%s320 + $0x48] sm:$0xff] %vm632, %v625
      %643 = vst.msk [vmem:[%s320 + $0x50] sm:$0xff] %vm632, %v626
      %644 = vst.msk [vmem:[%s320 + $0x58] sm:$0xff] %vm632, %v627
      %645 = vst.msk [vmem:[%s320 + $0x60] sm:$0xff] %vm632, %v628
      %646 = vst.msk [vmem:[%s320 + $0x68] sm:$0xff] %vm632, %v629
      %647 = vst.msk [vmem:[%s320 + $0x70] sm:$0xff] %vm632, %v630
      %648 = vst.msk [vmem:[%s320 + $0x78] sm:$0xff] %vm632, %v631
      %s649 = smul.u32 8, %s23
      %p650 = scmp.lt.s32.totalorder %s22, 1
      %s651 = scalar_select %p650, %s22, 1
      %p652 = scmp.lt.s32.totalorder %s649, 15
      %s653 = scalar_select %p652, %s649, 15
      %s654 = smul.addr %s653, 2
      %s655 = smul.addr %s651, 32
      %s656 = sadd.s32 %s654, %s655
      %s657 = smul.addr %s656, 4
      %s658 = scalar_lea.vmem %s5, %s657
      %s659 = smul.u32 8, %s23
      %p660 = scmp.lt.s32.totalorder %s22, 1
      %s661 = scalar_select %p660, %s22, 1
      %p662 = scmp.lt.s32.totalorder %s659, 15
      %s663 = scalar_select %p662, %s659, 15
      %s664 = smul.addr %s663, 2
      %s665 = smul.addr %s661, 32
      %s666 = sadd.s32 %s664, %s665
      %s667 = smul.addr %s666, 8
      %s668 = scalar_lea.vmem %s6, %s667
      // Predicated region
      $region41: #{tpu_custom_call.1} parent=39 // pred_check
        %p669 = pneg %p162
      $region42: #{tpu_custom_call.1} parent=39 // pred_check_branch
        %671 = sbr.rel (%p669) target = $region44
      $region43: #{tpu_custom_call.1} parent=39 // pred_region
        %s672 = smul.u32 8, %s23
      $region44: #{tpu_custom_call.1} parent=39 // pred_fallthru
        _
      // Predicated region
      $region45: #{tpu_custom_call.1} parent=39 // pred_check
        %p673 = pneg %p190
      $region46: #{tpu_custom_call.1} parent=39 // pred_check_branch
        %675 = sbr.rel (%p673) target = $region48
      $region47: #{tpu_custom_call.1} parent=39 // pred_region
        %s676 = smul.u32 8, %s23
      $region48: #{tpu_custom_call.1} parent=39 // pred_fallthru
        _
    $region40: #{tpu_custom_call.1} parent=5 // pred_fallthru
      _
    %p677 = scmp.le.s32.totalorder 2, %s13
    // Predicated region
    $region49: #{tpu_custom_call.1} parent=5 // pred_check
      %p678 = pneg %p677
    $region50: #{tpu_custom_call.1} parent=5 // pred_check_branch
      %680 = sbr.rel (%p678) target = $region52
    $region51: #{tpu_custom_call.1} parent=5 // pred_region
      %s681 = ssub.s32 %s13, 2
      // Predicated region
      $region53: #{tpu_custom_call.1} parent=51 // pred_check
        %p682 = pneg %p168
      $region54: #{tpu_custom_call.1} parent=51 // pred_check_branch
        %684 = sbr.rel (%p682) target = $region56
      $region55: #{tpu_custom_call.1} parent=51 // pred_region
        %s685 = smul.u32 8, %s25
        %p686 = scmp.lt.s32.totalorder %s24, 1
        %s687 = scalar_select %p686, %s24, 1
        %p688 = scmp.lt.s32.totalorder %s685, 15
        %s689 = scalar_select %p688, %s685, 15
        %s690 = smul.addr %s689, 2
        %s691 = smul.addr %s687, 32
        %s692 = sadd.s32 %s690, %s691
        %s693 = smul.addr %s692, 4
        %s694 = scalar_lea.vmem %s5, %s693
      $region56: #{tpu_custom_call.1} parent=51 // pred_fallthru
        _
      // Predicated region
      $region57: #{tpu_custom_call.1} parent=51 // pred_check
        %p695 = pneg %p196
      $region58: #{tpu_custom_call.1} parent=51 // pred_check_branch
        %697 = sbr.rel (%p695) target = $region60
      $region59: #{tpu_custom_call.1} parent=51 // pred_region
        %s698 = smul.u32 8, %s25
        %p699 = scmp.lt.s32.totalorder %s24, 1
        %s700 = scalar_select %p699, %s24, 1
        %p701 = scmp.lt.s32.totalorder %s698, 15
        %s702 = scalar_select %p701, %s698, 15
        %s703 = smul.addr %s702, 2
        %s704 = smul.addr %s700, 32
        %s705 = sadd.s32 %s703, %s704
        %s706 = smul.addr %s705, 8
        %s707 = scalar_lea.vmem %s6, %s706
      $region60: #{tpu_custom_call.1} parent=51 // pred_fallthru
        _
    $region52: #{tpu_custom_call.1} parent=5 // pred_fallthru
      _
  $region6: #{tpu_custom_call.1} parent=0 // loop_footer
    %s17 = sadd.s32 1, %s13
  $region7: #{tpu_custom_call.1} parent=0 // loop_footer_branch
    %12 = sbr.rel target = $region3
  $region8: #{tpu_custom_call.1} parent=0 // loop_exit
    _

</llo_original>
